<compile_context>
chip_gen: v6e
topology: v6e:2x2x1
jax: 0.10.0
libtpu: 0.0.40
codegen_flags: <defaults>
</compile_context>

<pallas_src>
import jax
import jax.numpy as jnp
from jax.experimental import pallas as pl
from jax.experimental.pallas import tpu as pltpu

LANES = 128
_TARGET_BLOCK_BYTES = 4 << 20   # ~4 MiB per (single) buffer, dtype-agnostic
_ROW_ALIGN = 32                 # keeps bf16/int8 sublane packing unmasked


def _make_mul_kernel(scale: float):
    def _mul_kernel(x_ref, o_ref):
        # Promote to f32 for the multiply, cast back to the output dtype.
        # (No-op for f32; avoids rounding `scale` to bf16/fp8 first. The cast
        # and vmul are free VLIW filler — the kernel is HBM-bandwidth bound.)
        o_ref[...] = (x_ref[...].astype(jnp.float32) * scale).astype(o_ref.dtype)

    return _mul_kernel


def _block_rows(rows: int, itemsize: int) -> int:
    """Rows per block: ~4 MiB/buffer, multiple of 32, >=2 grid steps if possible."""
    br = _TARGET_BLOCK_BYTES // (LANES * itemsize)
    br = max((br // _ROW_ALIGN) * _ROW_ALIGN, _ROW_ALIGN)
    rows_up = -(-rows // _ROW_ALIGN) * _ROW_ALIGN
    br = min(br, rows_up)
    # v7x has 2 TensorCores and the "parallel" grid axis is sharded across
    # them: make sure there are at least 2 steps whenever the array allows it.
    while pl.cdiv(rows, br) < 2 and br >= 2 * _ROW_ALIGN:
        br = max(((br // 2) // _ROW_ALIGN) * _ROW_ALIGN, _ROW_ALIGN)
    return br


def _mul_2d(x2d: jax.Array, scale: float, donate: bool = False) -> jax.Array:
    rows = x2d.shape[0]
    block_rows = _block_rows(rows, x2d.dtype.itemsize)
    grid = (pl.cdiv(rows, block_rows),)
    return pl.pallas_call(
        _make_mul_kernel(scale),
        out_shape=jax.ShapeDtypeStruct((rows, LANES), x2d.dtype),
        grid=grid,
        in_specs=[pl.BlockSpec((block_rows, LANES), lambda i: (i, 0))],
        out_specs=pl.BlockSpec((block_rows, LANES), lambda i: (i, 0)),
        compiler_params=pltpu.CompilerParams(
            dimension_semantics=("parallel",)),
        # Optional in-place update: halves HBM footprint (bytes moved unchanged).
        input_output_aliases=({0: 0} if donate else {}),
    )(x2d)


def mul_scale(x: jax.Array, scale: float, donate: bool = False) -> jax.Array:
    """Elementwise x * scale, equivalent to Mul(scale).forward(x)."""
    orig_shape = x.shape
    n = x.size
    if n == 0:
        return x

    if n % LANES == 0:
        # Fast path (typical conv activations): contiguous reshape is free,
        # no pad / slice, so no extra HBM passes around the kernel.
        out2d = _mul_2d(x.reshape(n // LANES, LANES), scale, donate)
        return out2d.reshape(orig_shape)

    # Ragged-tail path (rare): Pallas on the 128-aligned prefix; the <128
    # element tail is a plain XLA multiply. One concat instead of the two
    # extra full-tensor HBM passes a pad+slice approach would pay.
    n_main = (n // LANES) * LANES
    x_flat = x.reshape(-1)
    parts = []
    if n_main:
        main_out = _mul_2d(x_flat[:n_main].reshape(n_main // LANES, LANES), scale)
        parts.append(main_out.reshape(-1))
    tail_out = (x_flat[n_main:].astype(jnp.float32) * scale).astype(x.dtype)
    parts.append(tail_out)
    return jnp.concatenate(parts).reshape(orig_shape)


if __name__ == "__main__":
    key = jax.random.PRNGKey(0)
    scale = 0.5  # static "parameter" from Mul(scale)

    # Small NCHW input consistent with a conv-net activation (aligned path).
    x = jax.random.normal(key, (2, 4, 16, 16), dtype=jnp.float32)
    out = jax.block_until_ready(mul_scale(x, scale))
    ref = x * scale
    assert out.shape == x.shape and out.dtype == x.dtype
    assert jnp.allclose(out, ref, atol=1e-6), "mismatch vs reference (aligned)"

    # Exercise the ragged-tail path once (size not a multiple of 128).
    key2 = jax.random.PRNGKey(0)
    y = jax.random.normal(key2, (3, 5, 7), dtype=jnp.float32)
    out_y = jax.block_until_ready(mul_scale(y, scale))
    assert out_y.shape == y.shape and out_y.dtype == y.dtype
    assert jnp.allclose(out_y, y * scale, atol=1e-6), "mismatch vs reference (ragged)"

    print("KERNEL_OK")
</pallas_src>

<mosaic_0001>
module attributes {stable_mosaic.version = 11 : i64} {
  func.func @_mul_kernel(%arg0: i32, %arg1: memref<32x128xf32, #tpu.memory_space<vmem>>, %arg2: memref<32x128xf32, #tpu.memory_space<vmem>>) attributes {dimension_semantics = [#tpu.dimension_semantics<parallel>], iteration_bounds = array<i64: 1>, scalar_prefetch = 0 : i64, scratch_operands = 0 : i64, tpu.core_type = #tpu.core_type<tc>, window_params = [{transform_indices = @transform_0, window_bounds = array<i64: 32, 128>}, {transform_indices = @transform_1, window_bounds = array<i64: 32, 128>}]} {
    %c0 = arith.constant 0 : index
    %c0_0 = arith.constant 0 : index
    %0 = vector.load %arg1[%c0, %c0_0] : memref<32x128xf32, #tpu.memory_space<vmem>>, vector<32x128xf32>
    %cst = arith.constant 5.000000e-01 : f32
    %1 = vector.broadcast %cst : f32 to vector<32x128xf32>
    %2 = arith.mulf %0, %1 : vector<32x128xf32>
    %c0_1 = arith.constant 0 : index
    %c0_2 = arith.constant 0 : index
    %3 = vector.load %arg2[%c0_1, %c0_2] : memref<32x128xf32, #tpu.memory_space<vmem>>, vector<32x128xf32>
    tpu.vector_store %arg2[%c0_1, %c0_2], %2 {strides = array<i32>} : memref<32x128xf32, #tpu.memory_space<vmem>>, vector<32x128xf32>,
    return
  }
  func.func @transform_0(%arg0: i32) -> (i32, i32) {
    %c0_i32 = arith.constant 0 : i32
    %c0_i32_0 = arith.constant 0 : i32
    return %arg0, %c0_i32 : i32, i32
  }
  func.func @transform_1(%arg0: i32) -> (i32, i32) {
    %c0_i32 = arith.constant 0 : i32
    %c0_i32_0 = arith.constant 0 : i32
    return %arg0, %c0_i32 : i32, i32
  }
}

</mosaic_0001>

<llo_original>
// kernel: tpu_custom_call.1
$region0: #{tpu_custom_call.1}
  #allocation0 [shape = 'u32[]', space=smem, size = 0x4, offset = 0x4, fixed_abs, tag = 'smem constant byte address 0x4 - core index']
  #allocation1 [shape = 'u32[144,128]{1,0:T(1,128)}', space=vmem, size = 0x12000, scoped, tag = 'internal scratch']
  %s0 = inlined_call_operand.hbm [shape: f32[16,128], index: 0, kind: input, shape index: {}]
  %s1 = inlined_call_operand.hbm [shape: f32[16,128], index: 1, kind: output, shape index: {}]
  %s2 = sld [smem:[#allocation0]]
  $region18: #{tpu_custom_call.1} parent=0
    _
  %s4 = ssub.s32 1, %s2
  %s5 = scalar_select 0, %s4, %s2
  $region1: #{tpu_custom_call.1} parent=0
    #allocation2 [shape = 'u8[16384]{0}', space=vmem, size = 0x4000, scoped, tag = 'input window, operand 0, single buffered']
    #allocation3 [shape = 's32[1]{0}', space=sflag, size = 0x4, scoped, tag = 'scoped memory for tpu_custom_call.1']
    #allocation4 [shape = 's32[1]{0}', space=sflag, size = 0x4, scoped, tag = 'scoped memory for tpu_custom_call.1']
    #allocation5 [shape = 'u8[16384]{0}', space=vmem, size = 0x4000, scoped, tag = 'output window, operand 0, single buffered']
    %6 = vsyncpa [#allocation3], 0
    %7 = vsyncpa [#allocation4], 0
    // Predicated region
    $region2: #{tpu_custom_call.1} parent=1 // pred_check
      _
    $region3: #{tpu_custom_call.1} parent=1 // pred_check_branch
      %9 = sbr.rel (0) target = $region5
    $region4: #{tpu_custom_call.1} parent=1 // pred_region
      %s11 = ssub.s32 512, 256
      %12 = vsyncadd [#allocation3], %s11
      %s13 = sshll.u32 [#allocation2], 4
      %s14 = int_to_ptr.vmem [resolvable:$true] %s13
      %19 = dma.hbm_to_vmem [thread:$0]  %s0, 256, %s14, [#allocation3], 128, 128, 8
    $region5: #{tpu_custom_call.1} parent=1 // pred_fallthru
      _
    // Predicated region
    $region6: #{tpu_custom_call.1} parent=1 // pred_check
      _
    $region7: #{tpu_custom_call.1} parent=1 // pred_check_branch
      %21 = sbr.rel (0) target = $region9
    $region8: #{tpu_custom_call.1} parent=1 // pred_region
      %22 = dma.done [#allocation3], 512
    $region9: #{tpu_custom_call.1} parent=1 // pred_fallthru
      _
    %v23 = vld [vmem:[#allocation2] sm:$0xff]
    %v24 = vld [vmem:[#allocation2 + $0x8] sm:$0xff]
    %v25 = vld [vmem:[#allocation2 + $0x10] sm:$0xff]
    %v26 = vld [vmem:[#allocation2 + $0x18] sm:$0xff]
    %v27 = vmul.f32 %v23, 0.5
    %v28 = vmul.f32 %v24, 0.5
    %v29 = vmul.f32 %v25, 0.5
    %v30 = vmul.f32 %v26, 0.5
    %31 = vst [vmem:[#allocation5] sm:$0xff] %v27
    %32 = vst [vmem:[#allocation5 + $0x8] sm:$0xff] %v28
    %33 = vst [vmem:[#allocation5 + $0x10] sm:$0xff] %v29
    %34 = vst [vmem:[#allocation5 + $0x18] sm:$0xff] %v30
    // Predicated region
    $region10: #{tpu_custom_call.1} parent=1 // pred_check
      _
    $region11: #{tpu_custom_call.1} parent=1 // pred_check_branch
      %36 = sbr.rel (0) target = $region13
    $region12: #{tpu_custom_call.1} parent=1 // pred_region
      %s38 = ssub.s32 512, 256
      %39 = vsyncadd [#allocation4], %s38
      %s40 = sshll.u32 [#allocation5], 4
      %s41 = int_to_ptr.vmem [resolvable:$true] %s40
      %46 = dma.vmem_to_hbm [thread:$0]  %s41, 256, %s1, [#allocation4], 128, 128, 8
    $region13: #{tpu_custom_call.1} parent=1 // pred_fallthru
      _
    // Predicated region
    $region14: #{tpu_custom_call.1} parent=1 // pred_check
      _
    $region15: #{tpu_custom_call.1} parent=1 // pred_check_branch
      %48 = sbr.rel (0) target = $region17
    $region16: #{tpu_custom_call.1} parent=1 // pred_region
      %49 = dma.done [#allocation4], 512
    $region17: #{tpu_custom_call.1} parent=1 // pred_fallthru
      _
    %50 = vsyncpa [#allocation3], 1
    %51 = vsyncpa [#allocation4], 1

</llo_original>
